<compile_context>
chip_gen: v5e
topology: v5e:2x2
jax: 0.10.0
libtpu: 0.0.40
codegen_flags: <defaults>
</compile_context>

<pallas_src>
import jax
import jax.numpy as jnp
import numpy as np
from jax.experimental import pallas as pl
from jax.experimental.pallas import tpu as pltpu

EPS = 1e-5


# --------------------------------------------------------------------------------------
# Weight preprocessing (wrapper side, weights only, tiny)
# --------------------------------------------------------------------------------------
def _band_matrix(w_hwio, w_out, *, ci_major):
    """Fold a 3x3 HWIO conv weight into a band matrix M such that

        lane_concat_dy(padded_row_image) @ M  ==  conv(x, padding=1) output rows

    Output lane layout is (wo, co) with co fastest (lane = wo*Cout + co).
    ci_major=True : input row lane layout (ci, wi), lane = ci*Wp + wi   (stage 1 / NCHW)
    ci_major=False: input row lane layout (wi, ci), lane = wi*Cin + ci  (stage 2 / packed)
    """
    kh, kw, cin, cout = w_hwio.shape
    wp = w_out + 2
    dxs = jnp.arange(kw)[:, None, None]
    wis = jnp.arange(wp)[None, :, None]
    wos = jnp.arange(w_out)[None, None, :]
    shift = (wis == wos + dxs).astype(w_hwio.dtype)            # (kw, Wp, W)
    if ci_major:
        m = jnp.einsum("yxic,xpw->yipwc", w_hwio, shift)       # (kh, Cin, Wp, W, Cout)
    else:
        m = jnp.einsum("yxic,xpw->ypiwc", w_hwio, shift)       # (kh, Wp, Cin, W, Cout)
    return m.reshape(kh * wp * cin, w_out * cout)


def _channel_selector(w_out, cout):
    """S[wo*Cout + co, c] = 1.0 iff co == c  (per-channel reduce / broadcast helper)."""
    lane = jnp.arange(w_out * cout)[:, None]
    ch = jnp.arange(cout)[None, :]
    return (lane % cout == ch).astype(jnp.float32)


# --------------------------------------------------------------------------------------
# Kernel
# --------------------------------------------------------------------------------------
def _conv_bn_relu_stage(pad_ref, m, gb, sel, sel_t, inv_n):
    """One (conv3x3 + BN(train stats) + ReLU) stage on the packed row image in `pad_ref`.

    pad_ref : (N, H+2, Lp) zero-padded row image (Lp = C_in * (W+2))
    m       : (3*Lp, W*Cout) band matrix
    gb      : (2, Cout) stacked [gamma; beta]
    returns : (N*H, W*Cout) lane-dense activation (lane = wo*Cout + co)
    """
    nb, hp, lp = pad_ref.shape
    h = hp - 2
    # im2col over dy only: lane-concat of 3 row-shifted views -> a single MXU matmul
    lhs = jnp.concatenate(
        [pad_ref[:, 0:h, :], pad_ref[:, 1:h + 1, :], pad_ref[:, 2:h + 2, :]], axis=-1)
    lhs = lhs.reshape(nb * h, 3 * lp)
    acc = jnp.dot(lhs, m, preferred_element_type=jnp.float32)       # (N*H, W*Cout)

    # BatchNorm2d training-mode statistics (mean / biased var over N*H*W per channel).
    # Single stacked per-channel reduce matmul: [sum; sum_sq] @ sel -> (2, Cout).
    col_stats = jnp.concatenate(
        [jnp.sum(acc, axis=0, keepdims=True),
         jnp.sum(acc * acc, axis=0, keepdims=True)], axis=0)        # (2, W*Cout)
    ch_stats = jnp.dot(col_stats, sel, preferred_element_type=jnp.float32)  # (2, Cout)
    mean = ch_stats[0:1, :] * inv_n
    var = ch_stats[1:2, :] * inv_n - mean * mean
    inv_std = jax.lax.rsqrt(var + EPS)                              # EUP, free slot
    scale = gb[0:1, :] * inv_std                                    # BN affine folded
    shift = gb[1:2, :] - mean * scale
    # Single stacked broadcast matmul back into the packed (wo, co) lane layout.
    ss = jnp.concatenate([scale, shift], axis=0)                    # (2, Cout)
    ss_p = jnp.dot(ss, sel_t, preferred_element_type=jnp.float32)   # (2, W*Cout)
    return jnp.maximum(acc * ss_p[0:1, :] + ss_p[1:2, :], 0.0)


def double_conv_kernel(x_ref, m1_ref, m2_ref, gb1_ref, gb2_ref, sel_ref, selt_ref,
                       o_ref, pad1_ref, pad2_ref):
    n, cin, h, w = x_ref.shape
    wp = w + 2
    cout = gb1_ref.shape[-1]
    inv_n = 1.0 / float(n * h * w)

    # ---- stage 1: NCHW input -> zero-padded row image (padding=1 done in-kernel) -------
    # pad1 lane layout: (ci, wi); per-channel slice stores straight off the NCHW ref,
    # so no NCHW->NHWC transpose is needed anywhere.
    pad1_ref[...] = jnp.zeros_like(pad1_ref)
    for ci in range(cin):                                    # static, cin is small
        pad1_ref[:, 1:h + 1, ci * wp + 1: ci * wp + 1 + w] = x_ref[:, ci, :, :]

    # NOTE: conv biases are intentionally NOT applied — train-mode BN mean subtraction
    # cancels them exactly, so they are dead work.
    y1 = _conv_bn_relu_stage(pad1_ref, m1_ref[...], gb1_ref[...],
                             sel_ref[...], selt_ref[...], inv_n)

    # ---- stage 2: y1 is already lane-packed (wo, co) -> single interior store ----------
    # pad2 lane layout: (wi, ci) with ci fastest; interior lanes [Cout, (W+1)*Cout).
    pad2_ref[...] = jnp.zeros_like(pad2_ref)
    pad2_ref[:, 1:h + 1, cout:(w + 1) * cout] = y1.reshape(n, h, w * cout)

    y2 = _conv_bn_relu_stage(pad2_ref, m2_ref[...], gb2_ref[...],
                             sel_ref[...], selt_ref[...], inv_n)
    o_ref[...] = y2.astype(o_ref.dtype)


# --------------------------------------------------------------------------------------
# Wrapper (NCHW in / NCHW out, matching the PyTorch module)
# --------------------------------------------------------------------------------------
@jax.jit
def double_conv_forward(x_nchw, params):
    n, cin, h, w = x_nchw.shape
    cout = params["g1"].shape[0]
    wp = w + 2

    m1 = _band_matrix(params["w1"], w, ci_major=True)    # (3*Cin*Wp,  W*Cout)
    m2 = _band_matrix(params["w2"], w, ci_major=False)   # (3*Wp*Cout, W*Cout)
    sel = _channel_selector(w, cout)                     # (W*Cout, Cout)
    sel_t = sel.T                                        # (Cout, W*Cout)
    gb1 = jnp.stack([params["g1"], params["be1"]], axis=0)   # (2, Cout)
    gb2 = jnp.stack([params["g2"], params["be2"]], axis=0)   # (2, Cout)

    vmem = pl.BlockSpec(memory_space=pltpu.MemorySpace.VMEM)
    out_packed = pl.pallas_call(
        double_conv_kernel,
        out_shape=jax.ShapeDtypeStruct((n * h, w * cout), jnp.float32),  # lane-dense
        in_specs=[vmem] * 7,
        out_specs=vmem,
        scratch_shapes=[
            pltpu.VMEM((n, h + 2, cin * wp), jnp.float32),    # padded row image, stage 1
            pltpu.VMEM((n, h + 2, cout * wp), jnp.float32),   # padded row image, stage 2
        ],
        compiler_params=pltpu.CompilerParams(vmem_limit_bytes=32 * 1024 * 1024),
    )(x_nchw, m1, m2, gb1, gb2, sel, sel_t)

    # Unpack (N*H, W*Cout) lane-packed rows -> NCHW once, outside the kernel.
    return jnp.transpose(out_packed.reshape(n, h, w, cout), (0, 3, 1, 2))


def init_params(key, in_channels, out_channels):
    k = jax.random.split(key, 8)
    # Conv weights generated in PyTorch OIHW layout, converted to HWIO.
    w1_oihw = 0.1 * jax.random.normal(k[0], (out_channels, in_channels, 3, 3), jnp.float32)
    w2_oihw = 0.1 * jax.random.normal(k[1], (out_channels, out_channels, 3, 3), jnp.float32)
    return {
        "w1": jnp.transpose(w1_oihw, (2, 3, 1, 0)),
        "b1": 0.1 * jax.random.normal(k[2], (out_channels,), jnp.float32),
        "g1": 1.0 + 0.1 * jax.random.normal(k[3], (out_channels,), jnp.float32),
        "be1": 0.1 * jax.random.normal(k[4], (out_channels,), jnp.float32),
        "w2": jnp.transpose(w2_oihw, (2, 3, 1, 0)),
        "b2": 0.1 * jax.random.normal(k[5], (out_channels,), jnp.float32),
        "g2": 1.0 + 0.1 * jax.random.normal(k[6], (out_channels,), jnp.float32),
        "be2": 0.1 * jax.random.normal(k[7], (out_channels,), jnp.float32),
    }


# --------------------------------------------------------------------------------------
# Pure-JAX reference (mirrors PyTorch Conv2d + BatchNorm2d(train) + ReLU, NCHW)
# --------------------------------------------------------------------------------------
def _ref_conv_bn_relu(x_nchw, w_hwio, b, g, be):
    w_oihw = jnp.transpose(w_hwio, (3, 2, 0, 1))
    y = jax.lax.conv_general_dilated(
        x_nchw, w_oihw, window_strides=(1, 1), padding="SAME",
        dimension_numbers=("NCHW", "OIHW", "NCHW"))
    y = y + b[None, :, None, None]
    mean = jnp.mean(y, axis=(0, 2, 3), keepdims=True)
    var = jnp.mean((y - mean) ** 2, axis=(0, 2, 3), keepdims=True)
    y = (y - mean) * jax.lax.rsqrt(var + EPS)
    y = y * g[None, :, None, None] + be[None, :, None, None]
    return jnp.maximum(y, 0.0)


def _ref_double_conv(x_nchw, p):
    y = _ref_conv_bn_relu(x_nchw, p["w1"], p["b1"], p["g1"], p["be1"])
    return _ref_conv_bn_relu(y, p["w2"], p["b2"], p["g2"], p["be2"])


if __name__ == "__main__":
    key = jax.random.PRNGKey(0)
    k_x, k_p = jax.random.split(key)

    batch, in_channels, out_channels, spatial = 2, 4, 8, 16
    x = jax.random.normal(k_x, (batch, in_channels, spatial, spatial), jnp.float32)
    params = init_params(k_p, in_channels, out_channels)

    out = double_conv_forward(x, params)
    out = jax.block_until_ready(out)

    ref = jax.block_until_ready(_ref_double_conv(x, params))
    assert out.shape == (batch, out_channels, spatial, spatial), out.shape
    np.testing.assert_allclose(np.asarray(out), np.asarray(ref), rtol=1e-4, atol=1e-4)

    print("KERNEL_OK")
</pallas_src>

<mosaic_0001>
module attributes {stable_mosaic.version = 11 : i64} {
  func.func @double_conv_kernel(%arg0: memref<2x4x16x16xf32, #tpu.memory_space<vmem>>, %arg1: memref<216x128xf32, #tpu.memory_space<vmem>>, %arg2: memref<432x128xf32, #tpu.memory_space<vmem>>, %arg3: memref<2x8xf32, #tpu.memory_space<vmem>>, %arg4: memref<2x8xf32, #tpu.memory_space<vmem>>, %arg5: memref<128x8xf32, #tpu.memory_space<vmem>>, %arg6: memref<8x128xf32, #tpu.memory_space<vmem>>, %arg7: memref<32x128xf32, #tpu.memory_space<vmem>>, %arg8: memref<2x18x72xf32, #tpu.memory_space<vmem>>, %arg9: memref<2x18x144xf32, #tpu.memory_space<vmem>>) attributes {dimension_semantics = [], scalar_prefetch = 0 : i64, scratch_operands = 2 : i64, tpu.core_type = #tpu.core_type<tc>} {
    %cst = arith.constant 0.000000e+00 : f32
    %0 = vector.broadcast %cst : f32 to vector<2x18x72xf32>
    %c0 = arith.constant 0 : index
    %c0_0 = arith.constant 0 : index
    %c0_1 = arith.constant 0 : index
    %1 = vector.load %arg8[%c0, %c0_0, %c0_1] : memref<2x18x72xf32, #tpu.memory_space<vmem>>, vector<2x18x72xf32>
    tpu.vector_store %arg8[%c0, %c0_0, %c0_1], %0 {strides = array<i32>} : memref<2x18x72xf32, #tpu.memory_space<vmem>>, vector<2x18x72xf32>,
    %c0_2 = arith.constant 0 : index
    %c0_3 = arith.constant 0 : index
    %c0_4 = arith.constant 0 : index
    %c0_5 = arith.constant 0 : index
    %2 = vector.load %arg0[%c0_2, %c0_3, %c0_4, %c0_5] : memref<2x4x16x16xf32, #tpu.memory_space<vmem>>, vector<2x1x16x16xf32>
    %3 = vector.shape_cast %2 : vector<2x1x16x16xf32> to vector<2x16x16xf32>
    %c0_6 = arith.constant 0 : index
    %c1 = arith.constant 1 : index
    %c1_7 = arith.constant 1 : index
    %4 = vector.load %arg8[%c0_6, %c1, %c1_7] : memref<2x18x72xf32, #tpu.memory_space<vmem>>, vector<2x16x16xf32>
    tpu.vector_store %arg8[%c0_6, %c1, %c1_7], %3 {strides = array<i32>} : memref<2x18x72xf32, #tpu.memory_space<vmem>>, vector<2x16x16xf32>,
    %c0_8 = arith.constant 0 : index
    %c1_9 = arith.constant 1 : index
    %c0_10 = arith.constant 0 : index
    %c0_11 = arith.constant 0 : index
    %5 = vector.load %arg0[%c0_8, %c1_9, %c0_10, %c0_11] : memref<2x4x16x16xf32, #tpu.memory_space<vmem>>, vector<2x1x16x16xf32>
    %6 = vector.shape_cast %5 : vector<2x1x16x16xf32> to vector<2x16x16xf32>
    %c0_12 = arith.constant 0 : index
    %c1_13 = arith.constant 1 : index
    %c19 = arith.constant 19 : index
    %7 = vector.load %arg8[%c0_12, %c1_13, %c19] : memref<2x18x72xf32, #tpu.memory_space<vmem>>, vector<2x16x16xf32>
    tpu.vector_store %arg8[%c0_12, %c1_13, %c19], %6 {strides = array<i32>} : memref<2x18x72xf32, #tpu.memory_space<vmem>>, vector<2x16x16xf32>,
    %c0_14 = arith.constant 0 : index
    %c2 = arith.constant 2 : index
    %c0_15 = arith.constant 0 : index
    %c0_16 = arith.constant 0 : index
    %8 = vector.load %arg0[%c0_14, %c2, %c0_15, %c0_16] : memref<2x4x16x16xf32, #tpu.memory_space<vmem>>, vector<2x1x16x16xf32>
    %9 = vector.shape_cast %8 : vector<2x1x16x16xf32> to vector<2x16x16xf32>
    %c0_17 = arith.constant 0 : index
    %c1_18 = arith.constant 1 : index
    %c37 = arith.constant 37 : index
    %10 = vector.load %arg8[%c0_17, %c1_18, %c37] : memref<2x18x72xf32, #tpu.memory_space<vmem>>, vector<2x16x16xf32>
    tpu.vector_store %arg8[%c0_17, %c1_18, %c37], %9 {strides = array<i32>} : memref<2x18x72xf32, #tpu.memory_space<vmem>>, vector<2x16x16xf32>,
    %c0_19 = arith.constant 0 : index
    %c3 = arith.constant 3 : index
    %c0_20 = arith.constant 0 : index
    %c0_21 = arith.constant 0 : index
    %11 = vector.load %arg0[%c0_19, %c3, %c0_20, %c0_21] : memref<2x4x16x16xf32, #tpu.memory_space<vmem>>, vector<2x1x16x16xf32>
    %12 = vector.shape_cast %11 : vector<2x1x16x16xf32> to vector<2x16x16xf32>
    %c0_22 = arith.constant 0 : index
    %c1_23 = arith.constant 1 : index
    %c55 = arith.constant 55 : index
    %13 = vector.load %arg8[%c0_22, %c1_23, %c55] : memref<2x18x72xf32, #tpu.memory_space<vmem>>, vector<2x16x16xf32>
    tpu.vector_store %arg8[%c0_22, %c1_23, %c55], %12 {strides = array<i32>} : memref<2x18x72xf32, #tpu.memory_space<vmem>>, vector<2x16x16xf32>,
    %c0_24 = arith.constant 0 : index
    %c0_25 = arith.constant 0 : index
    %14 = vector.load %arg1[%c0_24, %c0_25] : memref<216x128xf32, #tpu.memory_space<vmem>>, vector<216x128xf32>
    %c0_26 = arith.constant 0 : index
    %c0_27 = arith.constant 0 : index
    %15 = vector.load %arg3[%c0_26, %c0_27] : memref<2x8xf32, #tpu.memory_space<vmem>>, vector<2x8xf32>
    %c0_28 = arith.constant 0 : index
    %c0_29 = arith.constant 0 : index
    %16 = vector.load %arg5[%c0_28, %c0_29] : memref<128x8xf32, #tpu.memory_space<vmem>>, vector<128x8xf32>
    %c0_30 = arith.constant 0 : index
    %c0_31 = arith.constant 0 : index
    %17 = vector.load %arg6[%c0_30, %c0_31] : memref<8x128xf32, #tpu.memory_space<vmem>>, vector<8x128xf32>
    %c0_32 = arith.constant 0 : index
    %c0_33 = arith.constant 0 : index
    %c0_34 = arith.constant 0 : index
    %18 = vector.load %arg8[%c0_32, %c0_33, %c0_34] : memref<2x18x72xf32, #tpu.memory_space<vmem>>, vector<2x16x72xf32>
    %c0_35 = arith.constant 0 : index
    %c1_36 = arith.constant 1 : index
    %c0_37 = arith.constant 0 : index
    %19 = vector.load %arg8[%c0_35, %c1_36, %c0_37] : memref<2x18x72xf32, #tpu.memory_space<vmem>>, vector<2x16x72xf32>
    %c0_38 = arith.constant 0 : index
    %c2_39 = arith.constant 2 : index
    %c0_40 = arith.constant 0 : index
    %20 = vector.load %arg8[%c0_38, %c2_39, %c0_40] : memref<2x18x72xf32, #tpu.memory_space<vmem>>, vector<2x16x72xf32>
    %21 = tpu.concatenate %18, %19, %20 in 2 : vector<2x16x72xf32>, vector<2x16x72xf32>, vector<2x16x72xf32> -> vector<2x16x216xf32>
    %22 = vector.shape_cast %21 : vector<2x16x216xf32> to vector<32x216xf32>
    %cst_41 = arith.constant dense<0.000000e+00> : vector<32x128xf32>
    %23 = tpu.matmul %22, %14, %cst_41 {dimension_numbers = #tpu.dot_dimension_numbers<[1], [0], [0], [1], [0, 0, 1, 1], [], []>} : vector<32x216xf32>, vector<216x128xf32>, vector<32x128xf32> -> vector<32x128xf32>
    %cst_42 = arith.constant dense<0.000000e+00> : vector<128xf32>
    %24 = vector.multi_reduction <add>, %23, %cst_42 [0] : vector<32x128xf32> to vector<128xf32>
    %25 = vector.shape_cast %24 : vector<128xf32> to vector<1x128xf32>
    %26 = arith.mulf %23, %23 : vector<32x128xf32>
    %cst_43 = arith.constant dense<0.000000e+00> : vector<128xf32>
    %27 = vector.multi_reduction <add>, %26, %cst_43 [0] : vector<32x128xf32> to vector<128xf32>
    %28 = vector.shape_cast %27 : vector<128xf32> to vector<1x128xf32>
    %29 = tpu.concatenate %25, %28 in 0 : vector<1x128xf32>, vector<1x128xf32> -> vector<2x128xf32>
    %cst_44 = arith.constant dense<0.000000e+00> : vector<2x8xf32>
    %30 = tpu.matmul %29, %16, %cst_44 {dimension_numbers = #tpu.dot_dimension_numbers<[1], [0], [0], [1], [0, 0, 1, 1], [], []>} : vector<2x128xf32>, vector<128x8xf32>, vector<2x8xf32> -> vector<2x8xf32>
    %31 = vector.extract_strided_slice %30 {offsets = [0, 0], sizes = [1, 8], strides = [1, 1]} : vector<2x8xf32> to vector<1x8xf32>
    %cst_45 = arith.constant 0.001953125 : f32
    %32 = vector.broadcast %cst_45 : f32 to vector<1x8xf32>
    %33 = arith.mulf %31, %32 : vector<1x8xf32>
    %34 = vector.extract_strided_slice %30 {offsets = [1, 0], sizes = [1, 8], strides = [1, 1]} : vector<2x8xf32> to vector<1x8xf32>
    %cst_46 = arith.constant 0.001953125 : f32
    %35 = vector.broadcast %cst_46 : f32 to vector<1x8xf32>
    %36 = arith.mulf %34, %35 : vector<1x8xf32>
    %37 = arith.mulf %33, %33 : vector<1x8xf32>
    %38 = arith.subf %36, %37 : vector<1x8xf32>
    %cst_47 = arith.constant 9.99999974E-6 : f32
    %39 = vector.broadcast %cst_47 : f32 to vector<1x8xf32>
    %40 = arith.addf %38, %39 : vector<1x8xf32>
    %41 = math.rsqrt %40 : vector<1x8xf32>
    %42 = vector.extract_strided_slice %15 {offsets = [0, 0], sizes = [1, 8], strides = [1, 1]} : vector<2x8xf32> to vector<1x8xf32>
    %43 = arith.mulf %42, %41 : vector<1x8xf32>
    %44 = vector.extract_strided_slice %15 {offsets = [1, 0], sizes = [1, 8], strides = [1, 1]} : vector<2x8xf32> to vector<1x8xf32>
    %45 = arith.mulf %33, %43 : vector<1x8xf32>
    %46 = arith.subf %44, %45 : vector<1x8xf32>
    %47 = tpu.concatenate %43, %46 in 0 : vector<1x8xf32>, vector<1x8xf32> -> vector<2x8xf32>
    %cst_48 = arith.constant dense<0.000000e+00> : vector<2x128xf32>
    %48 = tpu.matmul %47, %17, %cst_48 {dimension_numbers = #tpu.dot_dimension_numbers<[1], [0], [0], [1], [0, 0, 1, 1], [], []>} : vector<2x8xf32>, vector<8x128xf32>, vector<2x128xf32> -> vector<2x128xf32>
    %49 = vector.extract_strided_slice %48 {offsets = [0, 0], sizes = [1, 128], strides = [1, 1]} : vector<2x128xf32> to vector<1x128xf32>
    %50 = vector.broadcast %49 : vector<1x128xf32> to vector<32x128xf32>
    %51 = arith.mulf %23, %50 : vector<32x128xf32>
    %52 = vector.extract_strided_slice %48 {offsets = [1, 0], sizes = [1, 128], strides = [1, 1]} : vector<2x128xf32> to vector<1x128xf32>
    %53 = vector.broadcast %52 : vector<1x128xf32> to vector<32x128xf32>
    %54 = arith.addf %51, %53 : vector<32x128xf32>
    %cst_49 = arith.constant 0.000000e+00 : f32
    %55 = vector.broadcast %cst_49 : f32 to vector<32x128xf32>
    %56 = arith.maximumf %54, %55 : vector<32x128xf32>
    %cst_50 = arith.constant 0.000000e+00 : f32
    %57 = vector.broadcast %cst_50 : f32 to vector<2x18x144xf32>
    %c0_51 = arith.constant 0 : index
    %c0_52 = arith.constant 0 : index
    %c0_53 = arith.constant 0 : index
    %58 = vector.load %arg9[%c0_51, %c0_52, %c0_53] : memref<2x18x144xf32, #tpu.memory_space<vmem>>, vector<2x18x144xf32>
    tpu.vector_store %arg9[%c0_51, %c0_52, %c0_53], %57 {strides = array<i32>} : memref<2x18x144xf32, #tpu.memory_space<vmem>>, vector<2x18x144xf32>,
    %59 = vector.shape_cast %56 : vector<32x128xf32> to vector<2x16x128xf32>
    %c0_54 = arith.constant 0 : index
    %c1_55 = arith.constant 1 : index
    %c8 = arith.constant 8 : index
    %60 = vector.load %arg9[%c0_54, %c1_55, %c8] : memref<2x18x144xf32, #tpu.memory_space<vmem>>, vector<2x16x128xf32>
    tpu.vector_store %arg9[%c0_54, %c1_55, %c8], %59 {strides = array<i32>} : memref<2x18x144xf32, #tpu.memory_space<vmem>>, vector<2x16x128xf32>,
    %c0_56 = arith.constant 0 : index
    %c0_57 = arith.constant 0 : index
    %61 = vector.load %arg2[%c0_56, %c0_57] : memref<432x128xf32, #tpu.memory_space<vmem>>, vector<432x128xf32>
    %c0_58 = arith.constant 0 : index
    %c0_59 = arith.constant 0 : index
    %62 = vector.load %arg4[%c0_58, %c0_59] : memref<2x8xf32, #tpu.memory_space<vmem>>, vector<2x8xf32>
    %c0_60 = arith.constant 0 : index
    %c0_61 = arith.constant 0 : index
    %63 = vector.load %arg5[%c0_60, %c0_61] : memref<128x8xf32, #tpu.memory_space<vmem>>, vector<128x8xf32>
    %c0_62 = arith.constant 0 : index
    %c0_63 = arith.constant 0 : index
    %64 = vector.load %arg6[%c0_62, %c0_63] : memref<8x128xf32, #tpu.memory_space<vmem>>, vector<8x128xf32>
    %c0_64 = arith.constant 0 : index
    %c0_65 = arith.constant 0 : index
    %c0_66 = arith.constant 0 : index
    %65 = vector.load %arg9[%c0_64, %c0_65, %c0_66] : memref<2x18x144xf32, #tpu.memory_space<vmem>>, vector<2x16x144xf32>
    %c0_67 = arith.constant 0 : index
    %c1_68 = arith.constant 1 : index
    %c0_69 = arith.constant 0 : index
    %66 = vector.load %arg9[%c0_67, %c1_68, %c0_69] : memref<2x18x144xf32, #tpu.memory_space<vmem>>, vector<2x16x144xf32>
    %c0_70 = arith.constant 0 : index
    %c2_71 = arith.constant 2 : index
    %c0_72 = arith.constant 0 : index
    %67 = vector.load %arg9[%c0_70, %c2_71, %c0_72] : memref<2x18x144xf32, #tpu.memory_space<vmem>>, vector<2x16x144xf32>
    %68 = tpu.concatenate %65, %66, %67 in 2 : vector<2x16x144xf32>, vector<2x16x144xf32>, vector<2x16x144xf32> -> vector<2x16x432xf32>
    %69 = vector.shape_cast %68 : vector<2x16x432xf32> to vector<32x432xf32>
    %cst_73 = arith.constant dense<0.000000e+00> : vector<32x128xf32>
    %70 = tpu.matmul %69, %61, %cst_73 {dimension_numbers = #tpu.dot_dimension_numbers<[1], [0], [0], [1], [0, 0, 1, 1], [], []>} : vector<32x432xf32>, vector<432x128xf32>, vector<32x128xf32> -> vector<32x128xf32>
    %cst_74 = arith.constant dense<0.000000e+00> : vector<128xf32>
    %71 = vector.multi_reduction <add>, %70, %cst_74 [0] : vector<32x128xf32> to vector<128xf32>
    %72 = vector.shape_cast %71 : vector<128xf32> to vector<1x128xf32>
    %73 = arith.mulf %70, %70 : vector<32x128xf32>
    %cst_75 = arith.constant dense<0.000000e+00> : vector<128xf32>
    %74 = vector.multi_reduction <add>, %73, %cst_75 [0] : vector<32x128xf32> to vector<128xf32>
    %75 = vector.shape_cast %74 : vector<128xf32> to vector<1x128xf32>
    %76 = tpu.concatenate %72, %75 in 0 : vector<1x128xf32>, vector<1x128xf32> -> vector<2x128xf32>
    %cst_76 = arith.constant dense<0.000000e+00> : vector<2x8xf32>
    %77 = tpu.matmul %76, %63, %cst_76 {dimension_numbers = #tpu.dot_dimension_numbers<[1], [0], [0], [1], [0, 0, 1, 1], [], []>} : vector<2x128xf32>, vector<128x8xf32>, vector<2x8xf32> -> vector<2x8xf32>
    %78 = vector.extract_strided_slice %77 {offsets = [0, 0], sizes = [1, 8], strides = [1, 1]} : vector<2x8xf32> to vector<1x8xf32>
    %cst_77 = arith.constant 0.001953125 : f32
    %79 = vector.broadcast %cst_77 : f32 to vector<1x8xf32>
    %80 = arith.mulf %78, %79 : vector<1x8xf32>
    %81 = vector.extract_strided_slice %77 {offsets = [1, 0], sizes = [1, 8], strides = [1, 1]} : vector<2x8xf32> to vector<1x8xf32>
    %cst_78 = arith.constant 0.001953125 : f32
    %82 = vector.broadcast %cst_78 : f32 to vector<1x8xf32>
    %83 = arith.mulf %81, %82 : vector<1x8xf32>
    %84 = arith.mulf %80, %80 : vector<1x8xf32>
    %85 = arith.subf %83, %84 : vector<1x8xf32>
    %cst_79 = arith.constant 9.99999974E-6 : f32
    %86 = vector.broadcast %cst_79 : f32 to vector<1x8xf32>
    %87 = arith.addf %85, %86 : vector<1x8xf32>
    %88 = math.rsqrt %87 : vector<1x8xf32>
    %89 = vector.extract_strided_slice %62 {offsets = [0, 0], sizes = [1, 8], strides = [1, 1]} : vector<2x8xf32> to vector<1x8xf32>
    %90 = arith.mulf %89, %88 : vector<1x8xf32>
    %91 = vector.extract_strided_slice %62 {offsets = [1, 0], sizes = [1, 8], strides = [1, 1]} : vector<2x8xf32> to vector<1x8xf32>
    %92 = arith.mulf %80, %90 : vector<1x8xf32>
    %93 = arith.subf %91, %92 : vector<1x8xf32>
    %94 = tpu.concatenate %90, %93 in 0 : vector<1x8xf32>, vector<1x8xf32> -> vector<2x8xf32>
    %cst_80 = arith.constant dense<0.000000e+00> : vector<2x128xf32>
    %95 = tpu.matmul %94, %64, %cst_80 {dimension_numbers = #tpu.dot_dimension_numbers<[1], [0], [0], [1], [0, 0, 1, 1], [], []>} : vector<2x8xf32>, vector<8x128xf32>, vector<2x128xf32> -> vector<2x128xf32>
    %96 = vector.extract_strided_slice %95 {offsets = [0, 0], sizes = [1, 128], strides = [1, 1]} : vector<2x128xf32> to vector<1x128xf32>
    %97 = vector.broadcast %96 : vector<1x128xf32> to vector<32x128xf32>
    %98 = arith.mulf %70, %97 : vector<32x128xf32>
    %99 = vector.extract_strided_slice %95 {offsets = [1, 0], sizes = [1, 128], strides = [1, 1]} : vector<2x128xf32> to vector<1x128xf32>
    %100 = vector.broadcast %99 : vector<1x128xf32> to vector<32x128xf32>
    %101 = arith.addf %98, %100 : vector<32x128xf32>
    %cst_81 = arith.constant 0.000000e+00 : f32
    %102 = vector.broadcast %cst_81 : f32 to vector<32x128xf32>
    %103 = arith.maximumf %101, %102 : vector<32x128xf32>
    %c0_82 = arith.constant 0 : index
    %c0_83 = arith.constant 0 : index
    %104 = vector.load %arg7[%c0_82, %c0_83] : memref<32x128xf32, #tpu.memory_space<vmem>>, vector<32x128xf32>
    tpu.vector_store %arg7[%c0_82, %c0_83], %103 {strides = array<i32>} : memref<32x128xf32, #tpu.memory_space<vmem>>, vector<32x128xf32>,
    return
  }
}

</mosaic_0001>

<llo_original>
// kernel: double_conv_forward.1
$region0: #{double_conv_forward.1}
  #allocation0 [shape = 'u32[]', space=smem, size = 0x4, offset = 0x4, fixed_abs, tag = 'smem constant byte address 0x4 - core index']
  #allocation1 [shape = 'u32[72,128]{1,0:T(1,128)}', space=vmem, size = 0x9000, scoped, tag = 'internal scratch']
  #allocation2 [shape = 'f32[2,18,72]{2,1,0:T(8,128)}', space=vmem, size = 0x6000, scoped, tag = 'scratch operand']
  #allocation3 [shape = 'f32[2,18,144]{2,1,0:T(8,128)}', space=vmem, size = 0xc000, scoped, tag = 'scratch operand']
  %s0 = inlined_call_operand.vmem [shape: f32[2,4,16,16], index: 0, kind: input, shape index: {}]
  %s1 = inlined_call_operand.vmem [shape: f32[216,128], index: 1, kind: input, shape index: {}]
  %s2 = inlined_call_operand.vmem [shape: f32[432,128], index: 2, kind: input, shape index: {}]
  %s3 = inlined_call_operand.vmem [shape: f32[2,8], index: 3, kind: input, shape index: {}]
  %s4 = inlined_call_operand.vmem [shape: f32[2,8], index: 4, kind: input, shape index: {}]
  %s5 = inlined_call_operand.vmem [shape: f32[128,8], index: 5, kind: input, shape index: {}]
  %s6 = inlined_call_operand.vmem [shape: f32[8,128], index: 6, kind: input, shape index: {}]
  %s7 = inlined_call_operand.vmem [shape: f32[32,128], index: 7, kind: output, shape index: {}]
  %s8 = sld [smem:[#allocation0]]
  $region38: #{double_conv_forward.1} parent=0
    _
  %s10 = ssub.s32 1, %s8
  %s11 = scalar_select 0, %s10, %s8
  // Predicated region
  $region2: #{double_conv_forward.1} parent=0 // pred_check
    _
  $region3: #{double_conv_forward.1} parent=0 // pred_check_branch
    %13 = sbr.rel (0) target = $region5
  $region4: #{double_conv_forward.1} parent=0 // pred_region
    _
  $region5: #{double_conv_forward.1} parent=0 // pred_fallthru
    _
  // Predicated region
  $region6: #{double_conv_forward.1} parent=0 // pred_check
    _
  $region7: #{double_conv_forward.1} parent=0 // pred_check_branch
    %15 = sbr.rel (0) target = $region9
  $region8: #{double_conv_forward.1} parent=0 // pred_region
    _
  $region9: #{double_conv_forward.1} parent=0 // pred_fallthru
    _
  // Predicated region
  $region10: #{double_conv_forward.1} parent=0 // pred_check
    _
  $region11: #{double_conv_forward.1} parent=0 // pred_check_branch
    %17 = sbr.rel (0) target = $region13
  $region12: #{double_conv_forward.1} parent=0 // pred_region
    _
  $region13: #{double_conv_forward.1} parent=0 // pred_fallthru
    _
  // Predicated region
  $region14: #{double_conv_forward.1} parent=0 // pred_check
    _
  $region15: #{double_conv_forward.1} parent=0 // pred_check_branch
    %19 = sbr.rel (0) target = $region17
  $region16: #{double_conv_forward.1} parent=0 // pred_region
    _
  $region17: #{double_conv_forward.1} parent=0 // pred_fallthru
    _
  // Predicated region
  $region18: #{double_conv_forward.1} parent=0 // pred_check
    _
  $region19: #{double_conv_forward.1} parent=0 // pred_check_branch
    %21 = sbr.rel (0) target = $region21
  $region20: #{double_conv_forward.1} parent=0 // pred_region
    _
  $region21: #{double_conv_forward.1} parent=0 // pred_fallthru
    _
  // Predicated region
  $region22: #{double_conv_forward.1} parent=0 // pred_check
    _
  $region23: #{double_conv_forward.1} parent=0 // pred_check_branch
    %23 = sbr.rel (0) target = $region25
  $region24: #{double_conv_forward.1} parent=0 // pred_region
    _
  $region25: #{double_conv_forward.1} parent=0 // pred_fallthru
    _
  // Predicated region
  $region26: #{double_conv_forward.1} parent=0 // pred_check
    _
  $region27: #{double_conv_forward.1} parent=0 // pred_check_branch
    %25 = sbr.rel (0) target = $region29
  $region28: #{double_conv_forward.1} parent=0 // pred_region
    _
  $region29: #{double_conv_forward.1} parent=0 // pred_fallthru
    _
  %vm26 = vcmask 588800
  %27 = vst.msk [vmem:[#allocation2] sm:$0xff] %vm26, 0.0
  %28 = vst.msk [vmem:[#allocation2 + $0x8] sm:$0xff] %vm26, 0.0
  %vm29 = vcmask 582656
  %30 = vst.msk [vmem:[#allocation2 + $0x10] sm:$0x3] %vm29, 0.0
  %31 = vst.msk [vmem:[#allocation2 + $0x18] sm:$0xff] %vm26, 0.0
  %32 = vst.msk [vmem:[#allocation2 + $0x20] sm:$0xff] %vm26, 0.0
  %33 = vst.msk [vmem:[#allocation2 + $0x28] sm:$0x3] %vm29, 0.0
  %v34 = vld [vmem:[%s0] sm:$0xff]
  %v35 = vld [vmem:[%s0 + $0x8] sm:$0xff]
  %v36 = vld [vmem:[%s0 + $0x40] sm:$0xff]
  %v37 = vld [vmem:[%s0 + $0x48] sm:$0xff]
  %42 = vrot.lane.b32.xlu0 %v34, 1
  %v43 = vpop.permute.xlu0 %42
  %44 = vrot.lane.b32.xlu0 %v35, 1
  %v45 = vpop.permute.xlu0 %44
  %46 = vrot.lane.b32.xlu0 %v36, 1
  %v47 = vpop.permute.xlu0 %46
  %48 = vrot.lane.b32.xlu0 %v37, 1
  %v49 = vpop.permute.xlu0 %48
  %vm54 = vcmask 138248
  %55 = vst.msk [vmem:[#allocation2 + $0x1] sm:$0xff] %vm54, %v43
  %56 = vst.msk [vmem:[#allocation2 + $0x9] sm:$0xff] %vm54, %v45
  %57 = vst.msk [vmem:[#allocation2 + $0x19] sm:$0xff] %vm54, %v47
  %58 = vst.msk [vmem:[#allocation2 + $0x21] sm:$0xff] %vm54, %v49
  %s59 = scalar_lea.vmem %s0, 16
  %v60 = vld [vmem:[%s59] sm:$0xff]
  %v61 = vld [vmem:[%s59 + $0x8] sm:$0xff]
  %v62 = vld [vmem:[%s59 + $0x40] sm:$0xff]
  %v63 = vld [vmem:[%s59 + $0x48] sm:$0xff]
  %68 = vrot.lane.b32.xlu0 %v60, 19
  %v69 = vpop.permute.xlu0 %68
  %70 = vrot.lane.b32.xlu0 %v61, 19
  %v71 = vpop.permute.xlu0 %70
  %72 = vrot.lane.b32.xlu0 %v62, 19
  %v73 = vpop.permute.xlu0 %72
  %74 = vrot.lane.b32.xlu0 %v63, 19
  %v75 = vpop.permute.xlu0 %74
  %vm80 = vcmask 285848
  %81 = vst.msk [vmem:[#allocation2 + $0x1] sm:$0xff] %vm80, %v69
  %82 = vst.msk [vmem:[#allocation2 + $0x9] sm:$0xff] %vm80, %v71
  %83 = vst.msk [vmem:[#allocation2 + $0x19] sm:$0xff] %vm80, %v73
  %84 = vst.msk [vmem:[#allocation2 + $0x21] sm:$0xff] %vm80, %v75
  %s85 = scalar_lea.vmem %s0, 32
  %v86 = vld [vmem:[%s85] sm:$0xff]
  %v87 = vld [vmem:[%s85 + $0x8] sm:$0xff]
  %v88 = vld [vmem:[%s85 + $0x40] sm:$0xff]
  %v89 = vld [vmem:[%s85 + $0x48] sm:$0xff]
  %94 = vrot.lane.b32.xlu0 %v86, 37
  %v95 = vpop.permute.xlu0 %94
  %96 = vrot.lane.b32.xlu0 %v87, 37
  %v97 = vpop.permute.xlu0 %96
  %98 = vrot.lane.b32.xlu0 %v88, 37
  %v99 = vpop.permute.xlu0 %98
  %100 = vrot.lane.b32.xlu0 %v89, 37
  %v101 = vpop.permute.xlu0 %100
  %vm106 = vcmask 433448
  %107 = vst.msk [vmem:[#allocation2 + $0x1] sm:$0xff] %vm106, %v95
  %108 = vst.msk [vmem:[#allocation2 + $0x9] sm:$0xff] %vm106, %v97
  %109 = vst.msk [vmem:[#allocation2 + $0x19] sm:$0xff] %vm106, %v99
  %110 = vst.msk [vmem:[#allocation2 + $0x21] sm:$0xff] %vm106, %v101
  %s111 = scalar_lea.vmem %s0, 48
  %v112 = vld [vmem:[%s111] sm:$0xff]
  %v113 = vld [vmem:[%s111 + $0x8] sm:$0xff]
  %v114 = vld [vmem:[%s111 + $0x40] sm:$0xff]
  %v115 = vld [vmem:[%s111 + $0x48] sm:$0xff]
  %120 = vrot.lane.b32.xlu0 %v112, 55
  %v121 = vpop.permute.xlu0 %120
  %122 = vrot.lane.b32.xlu0 %v113, 55
  %v123 = vpop.permute.xlu0 %122
  %124 = vrot.lane.b32.xlu0 %v114, 55
  %v125 = vpop.permute.xlu0 %124
  %126 = vrot.lane.b32.xlu0 %v115, 55
  %v127 = vpop.permute.xlu0 %126
  %vm132 = vcmask 581048
  %133 = vst.msk [vmem:[#allocation2 + $0x1] sm:$0xff] %vm132, %v121
  %134 = vst.msk [vmem:[#allocation2 + $0x9] sm:$0xff] %vm132, %v123
  %135 = vst.msk [vmem:[#allocation2 + $0x19] sm:$0xff] %vm132, %v125
  %136 = vst.msk [vmem:[#allocation2 + $0x21] sm:$0xff] %vm132, %v127
  %v137 = vld [vmem:[%s1] sm:$0xff]
  %v138 = vld [vmem:[%s1 + $0x8] sm:$0xff]
  %v139 = vld [vmem:[%s1 + $0x10] sm:$0xff]
  %v140 = vld [vmem:[%s1 + $0x18] sm:$0xff]
  %v141 = vld [vmem:[%s1 + $0x20] sm:$0xff]
  %v142 = vld [vmem:[%s1 + $0x28] sm:$0xff]
  %v143 = vld [vmem:[%s1 + $0x30] sm:$0xff]
  %v144 = vld [vmem:[%s1 + $0x38] sm:$0xff]
  %v145 = vld [vmem:[%s1 + $0x40] sm:$0xff]
  %v146 = vld [vmem:[%s1 + $0x48] sm:$0xff]
  %v147 = vld [vmem:[%s1 + $0x50] sm:$0xff]
  %v148 = vld [vmem:[%s1 + $0x58] sm:$0xff]
  %v149 = vld [vmem:[%s1 + $0x60] sm:$0xff]
  %v150 = vld [vmem:[%s1 + $0x68] sm:$0xff]
  %v151 = vld [vmem:[%s1 + $0x70] sm:$0xff]
  %v152 = vld [vmem:[%s1 + $0x78] sm:$0xff]
  %v153 = vld [vmem:[%s1 + $0x80] sm:$0xff]
  %v154 = vld [vmem:[%s1 + $0x88] sm:$0xff]
  %v155 = vld [vmem:[%s1 + $0x90] sm:$0xff]
  %v156 = vld [vmem:[%s1 + $0x98] sm:$0xff]
  %v157 = vld [vmem:[%s1 + $0xa0] sm:$0xff]
  %v158 = vld [vmem:[%s1 + $0xa8] sm:$0xff]
  %v159 = vld [vmem:[%s1 + $0xb0] sm:$0xff]
  %v160 = vld [vmem:[%s1 + $0xb8] sm:$0xff]
  %v161 = vld [vmem:[%s1 + $0xc0] sm:$0xff]
  %v162 = vld [vmem:[%s1 + $0xc8] sm:$0xff]
  %v163 = vld [vmem:[%s1 + $0xd0] sm:$0xff]
  %v164 = vld [vmem:[%s3] sm:$0x3]
  %v165 = vld [vmem:[%s5] sm:$0xff]
  %v166 = vld [vmem:[%s5 + $0x8] sm:$0xff]
  %v167 = vld [vmem:[%s5 + $0x10] sm:$0xff]
  %v168 = vld [vmem:[%s5 + $0x18] sm:$0xff]
  %v169 = vld [vmem:[%s5 + $0x20] sm:$0xff]
  %v170 = vld [vmem:[%s5 + $0x28] sm:$0xff]
  %v171 = vld [vmem:[%s5 + $0x30] sm:$0xff]
  %v172 = vld [vmem:[%s5 + $0x38] sm:$0xff]
  %v173 = vld [vmem:[%s5 + $0x40] sm:$0xff]
  %v174 = vld [vmem:[%s5 + $0x48] sm:$0xff]
  %v175 = vld [vmem:[%s5 + $0x50] sm:$0xff]
  %v176 = vld [vmem:[%s5 + $0x58] sm:$0xff]
  %v177 = vld [vmem:[%s5 + $0x60] sm:$0xff]
  %v178 = vld [vmem:[%s5 + $0x68] sm:$0xff]
  %v179 = vld [vmem:[%s5 + $0x70] sm:$0xff]
  %v180 = vld [vmem:[%s5 + $0x78] sm:$0xff]
  %v181 = vld [vmem:[%s6] sm:$0xff]
  %v182 = vld [vmem:[#allocation2] sm:$0xff]
  %v183 = vld [vmem:[#allocation2 + $0x8] sm:$0xff]
  %v184 = vld [vmem:[#allocation2 + $0x18] sm:$0xff]
  %v185 = vld [vmem:[#allocation2 + $0x20] sm:$0xff]
  %v186 = vld [vmem:[#allocation2 + $0x1] sm:$0xff]
  %v187 = vld [vmem:[#allocation2 + $0x9] sm:$0xff]
  %v188 = vld [vmem:[#allocation2 + $0x19] sm:$0xff]
  %v189 = vld [vmem:[#allocation2 + $0x21] sm:$0xff]
  %v190 = vld [vmem:[#allocation2 + $0x2] sm:$0xff]
  %v191 = vld [vmem:[#allocation2 + $0xa] sm:$0xff]
  %v192 = vld [vmem:[#allocation2 + $0x1a] sm:$0xff]
  %v193 = vld [vmem:[#allocation2 + $0x22] sm:$0xff]
  %198 = vrot.lane.b32.xlu0 %v186, 72
  %v199 = vpop.permute.xlu0 %198
  %200 = vrot.lane.b32.xlu0 %v187, 72
  %v201 = vpop.permute.xlu0 %200
  %202 = vrot.lane.b32.xlu0 %v188, 72
  %v203 = vpop.permute.xlu0 %202
  %204 = vrot.lane.b32.xlu0 %v189, 72
  %v205 = vpop.permute.xlu0 %204
  %214 = vrot.lane.b32.xlu0 %v190, 16
  %v215 = vpop.permute.xlu0 %214
  %216 = vrot.lane.b32.xlu0 %v191, 16
  %v217 = vpop.permute.xlu0 %216
  %218 = vrot.lane.b32.xlu0 %v192, 16
  %v219 = vpop.permute.xlu0 %218
  %220 = vrot.lane.b32.xlu0 %v193, 16
  %v221 = vpop.permute.xlu0 %220
  %v226 = vsel %vm26, %v182, %v199
  %v227 = vsel %vm26, %v183, %v201
  %v228 = vsel %vm26, %v184, %v203
  %v229 = vsel %vm26, %v185, %v205
  %vm230 = vcmask 130048
  %v231 = vsel %vm230, %v199, %v215
  %v232 = vsel %vm230, %v201, %v217
  %v233 = vsel %vm230, %v203, %v219
  %v234 = vsel %vm230, %v205, %v221
  %vm235 = vcmask 719872
  %v237 = vsel %vm235, %v231, 0
  %v240 = vsel %vm235, %v232, 0
  %v243 = vsel %vm235, %v233, 0
  %v246 = vsel %vm235, %v234, 0
  %248 = vmatpush.msra.mxu0 %v152
  %249 = vmatpush.msra.mxu0 %v151
  %250 = vmatpush.msra.mxu0 %v150
  %251 = vmatpush.msra.mxu0 %v149
  %252 = vmatpush.msra.mxu0 %v148
  %253 = vmatpush.msra.mxu0 %v147
  %254 = vmatpush.msra.mxu0 %v146
  %255 = vmatpush.msra.mxu0 %v145
  %256 = vmatpush.msra.mxu0 %v144
  %257 = vmatpush.msra.mxu0 %v143
  %258 = vmatpush.msra.mxu0 %v142
  %259 = vmatpush.msra.mxu0 %v141
  %260 = vmatpush.msra.mxu0 %v140
  %261 = vmatpush.msra.mxu0 %v139
  %262 = vmatpush.msra.mxu0 %v138
  %263 = vmatpush.msra.mxu0 %v137
  %264 = vmatmul.f32.gmra.mxu0 %v226
  %v265 = vpop.f32.mrf.mxu0
  %v266 = vadd.f32 0.0, %v265
  %267 = vmatmul.f32.gmra.mxu0 %v227
  %v268 = vpop.f32.mrf.mxu0
  %v269 = vadd.f32 0.0, %v268
  %270 = vmatmul.f32.gmra.mxu0 %v228
  %v271 = vpop.f32.mrf.mxu0
  %v272 = vadd.f32 0.0, %v271
  %273 = vmatmul.f32.gmra.mxu0 %v229
  %v274 = vpop.f32.mrf.mxu0
  %v275 = vadd.f32 0.0, %v274
  %276 = vdwg.mxu0
  %277 = vmatpush.msra.mxu0 0.0
  %278 = vmatpush.msra.mxu0 0.0
  %279 = vmatpush.msra.mxu0 0.0
  %280 = vmatpush.msra.mxu0 0.0
  %281 = vmatpush.msra.mxu0 0.0
  %282 = vmatpush.msra.mxu0 %v163
  %283 = vmatpush.msra.mxu0 %v162
  %284 = vmatpush.msra.mxu0 %v161
  %285 = vmatpush.msra.mxu0 %v160
  %286 = vmatpush.msra.mxu0 %v159
  %287 = vmatpush.msra.mxu0 %v158
  %288 = vmatpush.msra.mxu0 %v157
  %289 = vmatpush.msra.mxu0 %v156
  %290 = vmatpush.msra.mxu0 %v155
  %291 = vmatpush.msra.mxu0 %v154
  %292 = vmatpush.msra.mxu0 %v153
  %293 = vmatmul.f32.gmra.mxu0 %v237
  %v294 = vpop.f32.mrf.mxu0
  %v295 = vadd.f32 %v266, %v294
  %296 = vmatmul.f32.gmra.mxu0 %v240
  %v297 = vpop.f32.mrf.mxu0
  %v298 = vadd.f32 %v269, %v297
  %299 = vmatmul.f32.gmra.mxu0 %v243
  %v300 = vpop.f32.mrf.mxu0
  %v301 = vadd.f32 %v272, %v300
  %302 = vmatmul.f32.gmra.mxu0 %v246
  %v303 = vpop.f32.mrf.mxu0
  %v304 = vadd.f32 %v275, %v303
  %305 = vdwg.mxu0
  %v306 = vadd.f32 %v295, %v298
  %v307 = vadd.f32 %v306, %v301
  %v308 = vadd.f32 %v307, %v304
  %v309 = vrot.slane %v308, 4
  %v310 = vadd.f32 %v308, %v309
  %v311 = vrot.slane %v310, 2
  %v312 = vadd.f32 %v310, %v311
  %v313 = vrot.slane %v312, 1
  %v314 = vadd.f32 %v312, %v313
  %v315 = vmul.f32 %v295, %v295
  %v316 = vmul.f32 %v298, %v298
  %v317 = vmul.f32 %v301, %v301
  %v318 = vmul.f32 %v304, %v304
  %v319 = vadd.f32 %v315, %v316
  %v320 = vadd.f32 %v319, %v317
  %v321 = vadd.f32 %v320, %v318
  %v322 = vrot.slane %v321, 4
  %v323 = vadd.f32 %v321, %v322
  %v324 = vrot.slane %v323, 2
  %v325 = vadd.f32 %v323, %v324
  %v326 = vrot.slane %v325, 1
  %v327 = vadd.f32 %v325, %v326
  %vm328 = vcmask 1040384
  %v329 = vsel %vm328, %v314, %v327
  %330 = vmatpush.msra.mxu0 %v180
  %331 = vmatpush.msra.mxu0 %v179
  %332 = vmatpush.msra.mxu0 %v178
  %333 = vmatpush.msra.mxu0 %v177
  %334 = vmatpush.msra.mxu0 %v176
  %335 = vmatpush.msra.mxu0 %v175
  %336 = vmatpush.msra.mxu0 %v174
  %337 = vmatpush.msra.mxu0 %v173
  %338 = vmatpush.msra.mxu0 %v172
  %339 = vmatpush.msra.mxu0 %v171
  %340 = vmatpush.msra.mxu0 %v170
  %341 = vmatpush.msra.mxu0 %v169
  %342 = vmatpush.msra.mxu0 %v168
  %343 = vmatpush.msra.mxu0 %v167
  %344 = vmatpush.msra.mxu0 %v166
  %345 = vmatpush.msra.mxu0 %v165
  %346 = vmatmul.f32.gmra.mxu0 %v329
  %v347 = vpop.f32.mrf.mxu0
  %v348 = vadd.f32 0.0, %v347
  %349 = vdwg.mxu0
  %v350 = vmul.f32 %v348, 0.001953125
  %v351 = vmul.f32 %v350, %v350
  %v353 = vrot.slane %v351, 7
  %v355 = vsub.f32 %v350, %v353
  %v356 = vadd.f32 %v355, 1e-05
  %v357 = vrsqrt.pop %v356
  %v358 = vmul.f32 %v357, %v356
  %v359 = vmul.f32 %v358, %v357
  %v360 = vmul.f32 0.5, %v359
  %v361 = vsub.f32 1.5, %v360
  %v362 = vmul.f32 %v357, %v361
  %vm363 = vweird.f32 %v356
  %vm364 = vweird.f32 %v357
  %vm365 = vmor %vm363, %vm364
  %v366 = vsel %vm365, %v357, %v362
  %v368 = vrot.slane %v366, 1
  %v370 = vmul.f32 %v164, %v368
  %v371 = vmul.f32 %v350, %v370
  %v373 = vrot.slane %v371, 7
  %v375 = vsub.f32 %v164, %v373
  %v376 = vsel %vm328, %v370, %v375
  %vm377 = vcmask 64512
  %v379 = vsel %vm377, %v376, 0
  %381 = vmatpush.msra.mxu0 0.0
  %382 = vmatpush.msra.mxu0 0.0
  %383 = vmatpush.msra.mxu0 0.0
  %384 = vmatpush.msra.mxu0 0.0
  %385 = vmatpush.msra.mxu0 0.0
  %386 = vmatpush.msra.mxu0 0.0
  %387 = vmatpush.msra.mxu0 0.0
  %388 = vmatpush.msra.mxu0 0.0
  %389 = vmatpush.msra.mxu0 0.0
  %390 = vmatpush.msra.mxu0 0.0
  %391 = vmatpush.msra.mxu0 0.0
  %392 = vmatpush.msra.mxu0 0.0
  %393 = vmatpush.msra.mxu0 0.0
  %394 = vmatpush.msra.mxu0 0.0
  %395 = vmatpush.msra.mxu0 0.0
  %396 = vmatpush.msra.mxu0 %v181
  %397 = vmatmul.f32.gmra.mxu0 %v379
  %v398 = vpop.f32.mrf.mxu0
  %v399 = vadd.f32 0.0, %v398
  %400 = vdwg.mxu0
  %v401 = vperm.slane %v399, 0
  %v402 = vmul.f32 %v295, %v401
  %v403 = vmul.f32 %v298, %v401
  %v404 = vmul.f32 %v301, %v401
  %v405 = vmul.f32 %v304, %v401
  %v406 = vperm.slane %v399, 1
  %v407 = vadd.f32 %v402, %v406
  %v408 = vadd.f32 %v403, %v406
  %v409 = vadd.f32 %v404, %v406
  %v410 = vadd.f32 %v405, %v406
  %v411 = vmax.f32 %v407, 0.0
  %v412 = vmax.f32 %v408, 0.0
  %v413 = vmax.f32 %v409, 0.0
  %v414 = vmax.f32 %v410, 0.0
  %415 = vst [vmem:[#allocation3] sm:$0xff] 0.0
  %416 = vst.msk [vmem:[#allocation3 + $0x8] sm:$0xff] %vm230, 0.0
  %417 = vst [vmem:[#allocation3 + $0x10] sm:$0xff] 0.0
  %418 = vst.msk [vmem:[#allocation3 + $0x18] sm:$0xff] %vm230, 0.0
  %419 = vst [vmem:[#allocation3 + $0x20] sm:$0x3] 0.0
  %vm420 = vcmask 123904
  %421 = vst.msk [vmem:[#allocation3 + $0x28] sm:$0x3] %vm420, 0.0
  %422 = vst [vmem:[#allocation3 + $0x30] sm:$0xff] 0.0
  %423 = vst.msk [vmem:[#allocation3 + $0x38] sm:$0xff] %vm230, 0.0
  %424 = vst [vmem:[#allocation3 + $0x40] sm:$0xff] 0.0
  %425 = vst.msk [vmem:[#allocation3 + $0x48] sm:$0xff] %vm230, 0.0
  %426 = vst [vmem:[#allocation3 + $0x50] sm:$0x3] 0.0
  %427 = vst.msk [vmem:[#allocation3 + $0x58] sm:$0x3] %vm420, 0.0
  %v432 = vrot.slane %v411, 7
  %v433 = vrot.slane %v412, 7
  %v434 = vsel %vm328, %v432, %v433
  %v435 = vrot.slane %v413, 7
  %v436 = vrot.slane %v414, 7
  %v437 = vsel %vm328, %v435, %v436
  %438 = vrot.lane.b32.xlu0 %v432, 8
  %v439 = vpop.permute.xlu0 %438
  %440 = vrot.lane.b32.xlu0 %v434, 8
  %v441 = vpop.permute.xlu0 %440
  %442 = vrot.lane.b32.xlu0 %v433, 8
  %v443 = vpop.permute.xlu0 %442
  %444 = vrot.lane.b32.xlu0 %v435, 8
  %v445 = vpop.permute.xlu0 %444
  %446 = vrot.lane.b32.xlu0 %v437, 8
  %v447 = vpop.permute.xlu0 %446
  %448 = vrot.lane.b32.xlu0 %v436, 8
  %v449 = vpop.permute.xlu0 %448
  %vm456 = vcmask 1047617
  %457 = vst.msk [vmem:[#allocation3] sm:$0xfe] %vm456, %v439
  %vm458 = vcmask 64513
  %459 = vst.msk [vmem:[#allocation3 + $0x8] sm:$0xfe] %vm458, %v439
  %vm460 = vcmask 1047616
  %461 = vst.msk [vmem:[#allocation3 + $0x10] sm:$0xff] %vm460, %v441
  %462 = vst.msk [vmem:[#allocation3 + $0x18] sm:$0xff] %vm377, %v441
  %vm463 = vcmask 1040448
  %464 = vst.msk [vmem:[#allocation3 + $0x20] sm:$0x1] %vm463, %v443
  %vm465 = vcmask 57344
  %466 = vst.msk [vmem:[#allocation3 + $0x28] sm:$0x1] %vm465, %v443
  %467 = vst.msk [vmem:[#allocation3 + $0x30] sm:$0xfe] %vm456, %v445
  %468 = vst.msk [vmem:[#allocation3 + $0x38] sm:$0xfe] %vm458, %v445
  %469 = vst.msk [vmem:[#allocation3 + $0x40] sm:$0xff] %vm460, %v447
  %470 = vst.msk [vmem:[#allocation3 + $0x48] sm:$0xff] %vm377, %v447
  %471 = vst.msk [vmem:[#allocation3 + $0x50] sm:$0x1] %vm463, %v449
  %472 = vst.msk [vmem:[#allocation3 + $0x58] sm:$0x1] %vm465, %v449
  %v473 = vld [vmem:[%s2] sm:$0xff]
  %v474 = vld [vmem:[%s2 + $0x8] sm:$0xff]
  %v475 = vld [vmem:[%s2 + $0x10] sm:$0xff]
  %v476 = vld [vmem:[%s2 + $0x18] sm:$0xff]
  %v477 = vld [vmem:[%s2 + $0x20] sm:$0xff]
  %v478 = vld [vmem:[%s2 + $0x28] sm:$0xff]
  %v479 = vld [vmem:[%s2 + $0x30] sm:$0xff]
  %v480 = vld [vmem:[%s2 + $0x38] sm:$0xff]
  %v481 = vld [vmem:[%s2 + $0x40] sm:$0xff]
  %v482 = vld [vmem:[%s2 + $0x48] sm:$0xff]
  %v483 = vld [vmem:[%s2 + $0x50] sm:$0xff]
  %v484 = vld [vmem:[%s2 + $0x58] sm:$0xff]
  %v485 = vld [vmem:[%s2 + $0x60] sm:$0xff]
  %v486 = vld [vmem:[%s2 + $0x68] sm:$0xff]
  %v487 = vld [vmem:[%s2 + $0x70] sm:$0xff]
  %v488 = vld [vmem:[%s2 + $0x78] sm:$0xff]
  %v489 = vld [vmem:[%s2 + $0x80] sm:$0xff]
  %v490 = vld [vmem:[%s2 + $0x88] sm:$0xff]
  %v491 = vld [vmem:[%s2 + $0x90] sm:$0xff]
  %v492 = vld [vmem:[%s2 + $0x98] sm:$0xff]
  %v493 = vld [vmem:[%s2 + $0xa0] sm:$0xff]
  %v494 = vld [vmem:[%s2 + $0xa8] sm:$0xff]
  %v495 = vld [vmem:[%s2 + $0xb0] sm:$0xff]
  %v496 = vld [vmem:[%s2 + $0xb8] sm:$0xff]
  %v497 = vld [vmem:[%s2 + $0xc0] sm:$0xff]
  %v498 = vld [vmem:[%s2 + $0xc8] sm:$0xff]
  %v499 = vld [vmem:[%s2 + $0xd0] sm:$0xff]
  %v500 = vld [vmem:[%s2 + $0xd8] sm:$0xff]
  %v501 = vld [vmem:[%s2 + $0xe0] sm:$0xff]
  %v502 = vld [vmem:[%s2 + $0xe8] sm:$0xff]
  %v503 = vld [vmem:[%s2 + $0xf0] sm:$0xff]
  %v504 = vld [vmem:[%s2 + $0xf8] sm:$0xff]
  %v505 = vld [vmem:[%s2 + $0x100] sm:$0xff]
  %v506 = vld [vmem:[%s2 + $0x108] sm:$0xff]
  %v507 = vld [vmem:[%s2 + $0x110] sm:$0xff]
  %v508 = vld [vmem:[%s2 + $0x118] sm:$0xff]
  %v509 = vld [vmem:[%s2 + $0x120] sm:$0xff]
  %v510 = vld [vmem:[%s2 + $0x128] sm:$0xff]
  %v511 = vld [vmem:[%s2 + $0x130] sm:$0xff]
  %v512 = vld [vmem:[%s2 + $0x138] sm:$0xff]
  %v513 = vld [vmem:[%s2 + $0x140] sm:$0xff]
  %v514 = vld [vmem:[%s2 + $0x148] sm:$0xff]
  %v515 = vld [vmem:[%s2 + $0x150] sm:$0xff]
  %v516 = vld [vmem:[%s2 + $0x158] sm:$0xff]
  %v517 = vld [vmem:[%s2 + $0x160] sm:$0xff]
  %v518 = vld [vmem:[%s2 + $0x168] sm:$0xff]
  %v519 = vld [vmem:[%s2 + $0x170] sm:$0xff]
  %v520 = vld [vmem:[%s2 + $0x178] sm:$0xff]
  %v521 = vld [vmem:[%s2 + $0x180] sm:$0xff]
  %v522 = vld [vmem:[%s2 + $0x188] sm:$0xff]
  %v523 = vld [vmem:[%s2 + $0x190] sm:$0xff]
  %v524 = vld [vmem:[%s2 + $0x198] sm:$0xff]
  %v525 = vld [vmem:[%s2 + $0x1a0] sm:$0xff]
  %v526 = vld [vmem:[%s2 + $0x1a8] sm:$0xff]
  %v527 = vld [vmem:[%s4] sm:$0x3]
  %v528 = vld [vmem:[%s5] sm:$0xff]
  %v529 = vld [vmem:[%s5 + $0x8] sm:$0xff]
  %v530 = vld [vmem:[%s5 + $0x10] sm:$0xff]
  %v531 = vld [vmem:[%s5 + $0x18] sm:$0xff]
  %v532 = vld [vmem:[%s5 + $0x20] sm:$0xff]
  %v533 = vld [vmem:[%s5 + $0x28] sm:$0xff]
  %v534 = vld [vmem:[%s5 + $0x30] sm:$0xff]
  %v535 = vld [vmem:[%s5 + $0x38] sm:$0xff]
  %v536 = vld [vmem:[%s5 + $0x40] sm:$0xff]
  %v537 = vld [vmem:[%s5 + $0x48] sm:$0xff]
  %v538 = vld [vmem:[%s5 + $0x50] sm:$0xff]
  %v539 = vld [vmem:[%s5 + $0x58] sm:$0xff]
  %v540 = vld [vmem:[%s5 + $0x60] sm:$0xff]
  %v541 = vld [vmem:[%s5 + $0x68] sm:$0xff]
  %v542 = vld [vmem:[%s5 + $0x70] sm:$0xff]
  %v543 = vld [vmem:[%s5 + $0x78] sm:$0xff]
  %v544 = vld [vmem:[%s6] sm:$0xff]
  %v545 = vld [vmem:[#allocation3] sm:$0xff]
  %v546 = vld [vmem:[#allocation3 + $0x8] sm:$0xff]
  %v547 = vld [vmem:[#allocation3 + $0x10] sm:$0xff]
  %v548 = vld [vmem:[#allocation3 + $0x18] sm:$0xff]
  %v549 = vld [vmem:[#allocation3 + $0x30] sm:$0xff]
  %v550 = vld [vmem:[#allocation3 + $0x38] sm:$0xff]
  %v551 = vld [vmem:[#allocation3 + $0x40] sm:$0xff]
  %v552 = vld [vmem:[#allocation3 + $0x48] sm:$0xff]
  %v553 = vld [vmem:[#allocation3] sm:$0xfe]
  %v554 = vld [vmem:[#allocation3 + $0x8] sm:$0xfe]
  %v555 = vld [vmem:[#allocation3 + $0x20] sm:$0x1]
  %v556 = vld [vmem:[#allocation3 + $0x28] sm:$0x1]
  %v557 = vld [vmem:[#allocation3 + $0x30] sm:$0xfe]
  %v558 = vld [vmem:[#allocation3 + $0x38] sm:$0xfe]
  %v559 = vld [vmem:[#allocation3 + $0x50] sm:$0x1]
  %v560 = vld [vmem:[#allocation3 + $0x58] sm:$0x1]
  %v561 = vld [vmem:[#allocation3] sm:$0xfc]
  %v562 = vld [vmem:[#allocation3 + $0x8] sm:$0xfc]
  %v563 = vld [vmem:[#allocation3 + $0x20] sm:$0x3]
  %v564 = vld [vmem:[#allocation3 + $0x28] sm:$0x3]
  %v565 = vld [vmem:[#allocation3 + $0x30] sm:$0xfc]
  %v566 = vld [vmem:[#allocation3 + $0x38] sm:$0xfc]
  %v567 = vld [vmem:[#allocation3 + $0x50] sm:$0x3]
  %v568 = vld [vmem:[#allocation3 + $0x58] sm:$0x3]
  %vm581 = vcmask 1046528
  %v582 = vrot.slane %v553, 1
  %v583 = vrot.slane %v547, 1
  %v584 = vsel %vm581, %v582, %v583
  %v585 = vrot.slane %v554, 1
  %v586 = vrot.slane %v548, 1
  %v587 = vsel %vm581, %v585, %v586
  %v588 = vrot.slane %v555, 1
  %v589 = vsel %vm581, %v583, %v588
  %v590 = vrot.slane %v556, 1
  %v591 = vsel %vm581, %v586, %v590
  %v592 = vrot.slane %v557, 1
  %v593 = vrot.slane %v551, 1
  %v594 = vsel %vm581, %v592, %v593
  %v595 = vrot.slane %v558, 1
  %v596 = vrot.slane %v552, 1
  %v597 = vsel %vm581, %v595, %v596
  %v598 = vrot.slane %v559, 1
  %v599 = vsel %vm581, %v593, %v598
  %v600 = vrot.slane %v560, 1
  %v601 = vsel %vm581, %v596, %v600
  %602 = vrot.lane.b32.xlu0 %v584, 16
  %v603 = vpop.permute.xlu0 %602
  %604 = vrot.lane.b32.xlu0 %v587, 16
  %v605 = vpop.permute.xlu0 %604
  %606 = vrot.lane.b32.xlu0 %v589, 16
  %v607 = vpop.permute.xlu0 %606
  %608 = vrot.lane.b32.xlu0 %v591, 16
  %v609 = vpop.permute.xlu0 %608
  %610 = vrot.lane.b32.xlu0 %v594, 16
  %v611 = vpop.permute.xlu0 %610
  %612 = vrot.lane.b32.xlu0 %v597, 16
  %v613 = vpop.permute.xlu0 %612
  %614 = vrot.lane.b32.xlu0 %v599, 16
  %v615 = vpop.permute.xlu0 %614
  %616 = vrot.lane.b32.xlu0 %v601, 16
  %v617 = vpop.permute.xlu0 %616
  %v618 = vsel %vm230, %v603, %v605
  %v619 = vsel %vm230, %v607, %v609
  %v620 = vsel %vm230, %v611, %v613
  %v621 = vsel %vm230, %v615, %v617
  %vm638 = vcmask 1045504
  %v639 = vrot.slane %v561, 2
  %v640 = vrot.slane %v547, 2
  %v641 = vsel %vm638, %v639, %v640
  %v642 = vrot.slane %v562, 2
  %v643 = vrot.slane %v548, 2
  %v644 = vsel %vm638, %v642, %v643
  %v645 = vrot.slane %v563, 2
  %v646 = vsel %vm638, %v640, %v645
  %v647 = vrot.slane %v564, 2
  %v648 = vsel %vm638, %v643, %v647
  %v649 = vrot.slane %v565, 2
  %v650 = vrot.slane %v551, 2
  %v651 = vsel %vm638, %v649, %v650
  %v652 = vrot.slane %v566, 2
  %v653 = vrot.slane %v552, 2
  %v654 = vsel %vm638, %v652, %v653
  %v655 = vrot.slane %v567, 2
  %v656 = vsel %vm638, %v650, %v655
  %v657 = vrot.slane %v568, 2
  %v658 = vsel %vm638, %v653, %v657
  %659 = vrot.lane.b32.xlu0 %v641, 32
  %v660 = vpop.permute.xlu0 %659
  %661 = vrot.lane.b32.xlu0 %v644, 32
  %v662 = vpop.permute.xlu0 %661
  %663 = vrot.lane.b32.xlu0 %v646, 32
  %v664 = vpop.permute.xlu0 %663
  %665 = vrot.lane.b32.xlu0 %v648, 32
  %v666 = vpop.permute.xlu0 %665
  %667 = vrot.lane.b32.xlu0 %v651, 32
  %v668 = vpop.permute.xlu0 %667
  %669 = vrot.lane.b32.xlu0 %v654, 32
  %v670 = vpop.permute.xlu0 %669
  %671 = vrot.lane.b32.xlu0 %v656, 32
  %v672 = vpop.permute.xlu0 %671
  %673 = vrot.lane.b32.xlu0 %v658, 32
  %v674 = vpop.permute.xlu0 %673
  %vm675 = vcmask 261120
  %v676 = vsel %vm675, %v660, %v662
  %v677 = vsel %vm675, %v664, %v666
  %v678 = vsel %vm675, %v668, %v670
  %v679 = vsel %vm675, %v672, %v674
  %v684 = vsel %vm230, %v546, %v603
  %v685 = vsel %vm230, %v548, %v607
  %v686 = vsel %vm230, %v550, %v611
  %v687 = vsel %vm230, %v552, %v615
  %v688 = vsel %vm675, %v618, %v660
  %v689 = vsel %vm675, %v619, %v664
  %v690 = vsel %vm675, %v620, %v668
  %v691 = vsel %vm675, %v621, %v672
  %vm692 = vcmask 392192
  %v693 = vsel %vm692, %v676, 0
  %v695 = vsel %vm692, %v677, 0
  %v697 = vsel %vm692, %v678, 0
  %v699 = vsel %vm692, %v679, 0
  %701 = vmatpush.msra.mxu0 %v488
  %702 = vmatpush.msra.mxu0 %v487
  %703 = vmatpush.msra.mxu0 %v486
  %704 = vmatpush.msra.mxu0 %v485
  %705 = vmatpush.msra.mxu0 %v484
  %706 = vmatpush.msra.mxu0 %v483
  %707 = vmatpush.msra.mxu0 %v482
  %708 = vmatpush.msra.mxu0 %v481
  %709 = vmatpush.msra.mxu0 %v480
  %710 = vmatpush.msra.mxu0 %v479
  %711 = vmatpush.msra.mxu0 %v478
  %712 = vmatpush.msra.mxu0 %v477
  %713 = vmatpush.msra.mxu0 %v476
  %714 = vmatpush.msra.mxu0 %v475
  %715 = vmatpush.msra.mxu0 %v474
  %716 = vmatpush.msra.mxu0 %v473
  %717 = vmatmul.f32.gmra.mxu0 %v545
  %v718 = vpop.f32.mrf.mxu0
  %v719 = vadd.f32 0.0, %v718
  %720 = vmatmul.f32.gmra.mxu0 %v547
  %v721 = vpop.f32.mrf.mxu0
  %v722 = vadd.f32 0.0, %v721
  %723 = vmatmul.f32.gmra.mxu0 %v549
  %v724 = vpop.f32.mrf.mxu0
  %v725 = vadd.f32 0.0, %v724
  %726 = vmatmul.f32.gmra.mxu0 %v551
  %v727 = vpop.f32.mrf.mxu0
  %v728 = vadd.f32 0.0, %v727
  %729 = vdwg.mxu0
  %730 = vmatpush.msra.mxu0 %v504
  %731 = vmatpush.msra.mxu0 %v503
  %732 = vmatpush.msra.mxu0 %v502
  %733 = vmatpush.msra.mxu0 %v501
  %734 = vmatpush.msra.mxu0 %v500
  %735 = vmatpush.msra.mxu0 %v499
  %736 = vmatpush.msra.mxu0 %v498
  %737 = vmatpush.msra.mxu0 %v497
  %738 = vmatpush.msra.mxu0 %v496
  %739 = vmatpush.msra.mxu0 %v495
  %740 = vmatpush.msra.mxu0 %v494
  %741 = vmatpush.msra.mxu0 %v493
  %742 = vmatpush.msra.mxu0 %v492
  %743 = vmatpush.msra.mxu0 %v491
  %744 = vmatpush.msra.mxu0 %v490
  %745 = vmatpush.msra.mxu0 %v489
  %746 = vmatmul.f32.gmra.mxu0 %v684
  %v747 = vpop.f32.mrf.mxu0
  %v748 = vadd.f32 %v719, %v747
  %749 = vmatmul.f32.gmra.mxu0 %v685
  %v750 = vpop.f32.mrf.mxu0
  %v751 = vadd.f32 %v722, %v750
  %752 = vmatmul.f32.gmra.mxu0 %v686
  %v753 = vpop.f32.mrf.mxu0
  %v754 = vadd.f32 %v725, %v753
  %755 = vmatmul.f32.gmra.mxu0 %v687
  %v756 = vpop.f32.mrf.mxu0
  %v757 = vadd.f32 %v728, %v756
  %758 = vdwg.mxu0
  %759 = vmatpush.msra.mxu0 %v520
  %760 = vmatpush.msra.mxu0 %v519
  %761 = vmatpush.msra.mxu0 %v518
  %762 = vmatpush.msra.mxu0 %v517
  %763 = vmatpush.msra.mxu0 %v516
  %764 = vmatpush.msra.mxu0 %v515
  %765 = vmatpush.msra.mxu0 %v514
  %766 = vmatpush.msra.mxu0 %v513
  %767 = vmatpush.msra.mxu0 %v512
  %768 = vmatpush.msra.mxu0 %v511
  %769 = vmatpush.msra.mxu0 %v510
  %770 = vmatpush.msra.mxu0 %v509
  %771 = vmatpush.msra.mxu0 %v508
  %772 = vmatpush.msra.mxu0 %v507
  %773 = vmatpush.msra.mxu0 %v506
  %774 = vmatpush.msra.mxu0 %v505
  %775 = vmatmul.f32.gmra.mxu0 %v688
  %v776 = vpop.f32.mrf.mxu0
  %v777 = vadd.f32 %v748, %v776
  %778 = vmatmul.f32.gmra.mxu0 %v689
  %v779 = vpop.f32.mrf.mxu0
  %v780 = vadd.f32 %v751, %v779
  %781 = vmatmul.f32.gmra.mxu0 %v690
  %v782 = vpop.f32.mrf.mxu0
  %v783 = vadd.f32 %v754, %v782
  %784 = vmatmul.f32.gmra.mxu0 %v691
  %v785 = vpop.f32.mrf.mxu0
  %v786 = vadd.f32 %v757, %v785
  %787 = vdwg.mxu0
  %788 = vmatpush.msra.mxu0 0.0
  %789 = vmatpush.msra.mxu0 0.0
  %790 = vmatpush.msra.mxu0 0.0
  %791 = vmatpush.msra.mxu0 0.0
  %792 = vmatpush.msra.mxu0 0.0
  %793 = vmatpush.msra.mxu0 0.0
  %794 = vmatpush.msra.mxu0 0.0
  %795 = vmatpush.msra.mxu0 0.0
  %796 = vmatpush.msra.mxu0 0.0
  %797 = vmatpush.msra.mxu0 0.0
  %798 = vmatpush.msra.mxu0 %v526
  %799 = vmatpush.msra.mxu0 %v525
  %800 = vmatpush.msra.mxu0 %v524
  %801 = vmatpush.msra.mxu0 %v523
  %802 = vmatpush.msra.mxu0 %v522
  %803 = vmatpush.msra.mxu0 %v521
  %804 = vmatmul.f32.gmra.mxu0 %v693
  %v805 = vpop.f32.mrf.mxu0
  %v806 = vadd.f32 %v777, %v805
  %807 = vmatmul.f32.gmra.mxu0 %v695
  %v808 = vpop.f32.mrf.mxu0
  %v809 = vadd.f32 %v780, %v808
  %810 = vmatmul.f32.gmra.mxu0 %v697
  %v811 = vpop.f32.mrf.mxu0
  %v812 = vadd.f32 %v783, %v811
  %813 = vmatmul.f32.gmra.mxu0 %v699
  %v814 = vpop.f32.mrf.mxu0
  %v815 = vadd.f32 %v786, %v814
  %816 = vdwg.mxu0
  %v817 = vadd.f32 %v806, %v809
  %v818 = vadd.f32 %v817, %v812
  %v819 = vadd.f32 %v818, %v815
  %v820 = vrot.slane %v819, 4
  %v821 = vadd.f32 %v819, %v820
  %v822 = vrot.slane %v821, 2
  %v823 = vadd.f32 %v821, %v822
  %v824 = vrot.slane %v823, 1
  %v825 = vadd.f32 %v823, %v824
  %v826 = vmul.f32 %v806, %v806
  %v827 = vmul.f32 %v809, %v809
  %v828 = vmul.f32 %v812, %v812
  %v829 = vmul.f32 %v815, %v815
  %v830 = vadd.f32 %v826, %v827
  %v831 = vadd.f32 %v830, %v828
  %v832 = vadd.f32 %v831, %v829
  %v833 = vrot.slane %v832, 4
  %v834 = vadd.f32 %v832, %v833
  %v835 = vrot.slane %v834, 2
  %v836 = vadd.f32 %v834, %v835
  %v837 = vrot.slane %v836, 1
  %v838 = vadd.f32 %v836, %v837
  %v839 = vsel %vm328, %v825, %v838
  %840 = vmatpush.msra.mxu0 %v543
  %841 = vmatpush.msra.mxu0 %v542
  %842 = vmatpush.msra.mxu0 %v541
  %843 = vmatpush.msra.mxu0 %v540
  %844 = vmatpush.msra.mxu0 %v539
  %845 = vmatpush.msra.mxu0 %v538
  %846 = vmatpush.msra.mxu0 %v537
  %847 = vmatpush.msra.mxu0 %v536
  %848 = vmatpush.msra.mxu0 %v535
  %849 = vmatpush.msra.mxu0 %v534
  %850 = vmatpush.msra.mxu0 %v533
  %851 = vmatpush.msra.mxu0 %v532
  %852 = vmatpush.msra.mxu0 %v531
  %853 = vmatpush.msra.mxu0 %v530
  %854 = vmatpush.msra.mxu0 %v529
  %855 = vmatpush.msra.mxu0 %v528
  %856 = vmatmul.f32.gmra.mxu0 %v839
  %v857 = vpop.f32.mrf.mxu0
  %v858 = vadd.f32 0.0, %v857
  %859 = vdwg.mxu0
  %v860 = vmul.f32 %v858, 0.001953125
  %v861 = vmul.f32 %v860, %v860
  %v863 = vrot.slane %v861, 7
  %v865 = vsub.f32 %v860, %v863
  %v866 = vadd.f32 %v865, 1e-05
  %v867 = vrsqrt.pop %v866
  %v868 = vmul.f32 %v867, %v866
  %v869 = vmul.f32 %v868, %v867
  %v870 = vmul.f32 0.5, %v869
  %v871 = vsub.f32 1.5, %v870
  %v872 = vmul.f32 %v867, %v871
  %vm873 = vweird.f32 %v866
  %vm874 = vweird.f32 %v867
  %vm875 = vmor %vm873, %vm874
  %v876 = vsel %vm875, %v867, %v872
  %v878 = vrot.slane %v876, 1
  %v880 = vmul.f32 %v527, %v878
  %v881 = vmul.f32 %v860, %v880
  %v883 = vrot.slane %v881, 7
  %v885 = vsub.f32 %v527, %v883
  %v886 = vsel %vm328, %v880, %v885
  %v888 = vsel %vm377, %v886, 0
  %890 = vmatpush.msra.mxu0 0.0
  %891 = vmatpush.msra.mxu0 0.0
  %892 = vmatpush.msra.mxu0 0.0
  %893 = vmatpush.msra.mxu0 0.0
  %894 = vmatpush.msra.mxu0 0.0
  %895 = vmatpush.msra.mxu0 0.0
  %896 = vmatpush.msra.mxu0 0.0
  %897 = vmatpush.msra.mxu0 0.0
  %898 = vmatpush.msra.mxu0 0.0
  %899 = vmatpush.msra.mxu0 0.0
  %900 = vmatpush.msra.mxu0 0.0
  %901 = vmatpush.msra.mxu0 0.0
  %902 = vmatpush.msra.mxu0 0.0
  %903 = vmatpush.msra.mxu0 0.0
  %904 = vmatpush.msra.mxu0 0.0
  %905 = vmatpush.msra.mxu0 %v544
  %906 = vmatmul.f32.gmra.mxu0 %v888
  %v907 = vpop.f32.mrf.mxu0
  %v908 = vadd.f32 0.0, %v907
  %909 = vdwg.mxu0
  %v910 = vperm.slane %v908, 0
  %v911 = vmul.f32 %v806, %v910
  %v912 = vmul.f32 %v809, %v910
  %v913 = vmul.f32 %v812, %v910
  %v914 = vmul.f32 %v815, %v910
  %v915 = vperm.slane %v908, 1
  %v916 = vadd.f32 %v911, %v915
  %v917 = vadd.f32 %v912, %v915
  %v918 = vadd.f32 %v913, %v915
  %v919 = vadd.f32 %v914, %v915
  %v920 = vmax.f32 %v916, 0.0
  %v921 = vmax.f32 %v917, 0.0
  %v922 = vmax.f32 %v918, 0.0
  %v923 = vmax.f32 %v919, 0.0
  %924 = vst [vmem:[%s7] sm:$0xff] %v920
  %925 = vst [vmem:[%s7 + $0x8] sm:$0xff] %v921
  %926 = vst [vmem:[%s7 + $0x10] sm:$0xff] %v922
  %927 = vst [vmem:[%s7 + $0x18] sm:$0xff] %v923
  // Predicated region
  $region30: #{double_conv_forward.1} parent=0 // pred_check
    _
  $region31: #{double_conv_forward.1} parent=0 // pred_check_branch
    %929 = sbr.rel (0) target = $region33
  $region32: #{double_conv_forward.1} parent=0 // pred_region
    _
  $region33: #{double_conv_forward.1} parent=0 // pred_fallthru
    _
  // Predicated region
  $region34: #{double_conv_forward.1} parent=0 // pred_check
    _
  $region35: #{double_conv_forward.1} parent=0 // pred_check_branch
    %931 = sbr.rel (0) target = $region37
  $region36: #{double_conv_forward.1} parent=0 // pred_region
    _
  $region37: #{double_conv_forward.1} parent=0 // pred_fallthru
    _

</llo_original>
